<compile_context>
chip_gen: v7x
topology: tpu7x:2x2x1
jax: 0.10.0
libtpu: 0.0.40
codegen_flags: <defaults>
</compile_context>

<pallas_src>
import functools

import jax
import jax.numpy as jnp
import numpy as np
from jax.experimental import pallas as pl
from jax.experimental.pallas import tpu as pltpu

LANE = 128
SUBLANE = 8


def _round_up(x, m):
    return ((x + m - 1) // m) * m


def _pad2d(x, rows, cols):
    r, c = x.shape
    if r == rows and c == cols:
        return x
    return jnp.pad(x, ((0, rows - r), (0, cols - c)))


# --------------------------- per-generation config ---------------------------

_CHIP_CFG = None


def _chip_config():
    """Tile rows / VMEM limit / bf16-VALU availability for the current TPU."""
    global _CHIP_CFG
    if _CHIP_CFG is not None:
        return _CHIP_CFG
    kind = ""
    try:
        kind = jax.devices()[0].device_kind.lower()
    except Exception:
        pass
    vmem_cap = None
    try:
        vmem_cap = int(pltpu.get_tpu_info().vmem_capacity_bytes)
    except Exception:
        vmem_cap = None
    if vmem_cap is None:
        vmem_cap = (64 << 20) if "v7" in kind else (128 << 20)
    _CHIP_CFG = {
        # leave headroom for compiler-internal scratch + double-buffered rows
        "vmem_limit_bytes": int(min(vmem_cap * 3 // 4, 100 << 20)),
        # larger tiles amortize the ~0.35us/step grid overhead where VMEM allows
        "tile_rows": 256 if vmem_cap <= (64 << 20) else 512,
        # v5e has no bf16 VALU -> keep the elementwise product in f32 there
        "mul_bf16": "v5" not in kind,
    }
    return _CHIP_CFG


# ------------------------------- Pallas kernels ------------------------------

def _edge_post_emb_kernel(x_ref, wec_ref, bec_ref, wpe_ref, bh_ref, bt_ref,
                          head_ref, tail_ref):
    """head/tail = split(relu(post_emb(edge_ctx(x)))) for one row tile.

    edge_ctx is the (stand-in) context projection, fused in-kernel; post_emb's
    two output halves share one (tile, 2*Hp) MXU matmul and are split with a
    lane-aligned static slice.  Outputs are stored as bf16."""
    hp = head_ref.shape[-1]
    edge = (jnp.dot(x_ref[...], wec_ref[...], preferred_element_type=jnp.float32)
            + bec_ref[...])
    y = jnp.dot(edge.astype(jnp.bfloat16), wpe_ref[...],
                preferred_element_type=jnp.float32)
    head_ref[...] = jnp.maximum(y[:, :hp] + bh_ref[...], 0.0).astype(head_ref.dtype)
    tail_ref[...] = jnp.maximum(y[:, hp:] + bt_ref[...], 0.0).astype(tail_ref.dtype)


def _rel_dists_kernel(head_ref, tail_ref, union_ref, frq_ref,
                      w_cat_h_ref, w_cat_t_ref, b_cat_ref,
                      w_up_ref, b_up_ref, w_ctx_ref, b_ctx_ref,
                      out_ref, *, mul_bf16):
    """Fused relation-head hot path for one row tile of R:
        prod_rep  = post_cat(cat(head, tail)) = head@Wh + tail@Wt + b   (tile, Pp)
        union_up  = up_dim(union_features)                               (tile, Pp)
        ctx_dists = ctx_compress(prod_rep * union_up)                    (tile, Cp)
        rel_dists = ctx_dists + freq_bias(pair_pred)                     (tile, Cp)
    head/tail/union arrive as bf16; all matmuls accumulate in f32."""
    prod = (jnp.dot(head_ref[...], w_cat_h_ref[...],
                    preferred_element_type=jnp.float32)
            + jnp.dot(tail_ref[...], w_cat_t_ref[...],
                      preferred_element_type=jnp.float32)
            + b_cat_ref[...])
    uni = (jnp.dot(union_ref[...], w_up_ref[...],
                   preferred_element_type=jnp.float32)
           + b_up_ref[...])
    if mul_bf16:
        fused = prod.astype(jnp.bfloat16) * uni.astype(jnp.bfloat16)
    else:
        fused = (prod * uni).astype(jnp.bfloat16)
    ctx = (jnp.dot(fused, w_ctx_ref[...], preferred_element_type=jnp.float32)
           + b_ctx_ref[...])
    out_ref[...] = ctx + frq_ref[...]


# -------------------------------- spec helpers --------------------------------

def _row_spec(tile, cols):
    return pl.BlockSpec((tile, cols), lambda i: (i, 0))


def _fix_spec(rows, cols, mode):
    # Resident (grid-invariant) operand; mode=pl.Buffered(1) disables
    # double-buffering of the weight block.
    if mode is None:
        return pl.BlockSpec((rows, cols), lambda i: (0, 0))
    return pl.BlockSpec((rows, cols), lambda i: (0, 0), pipeline_mode=mode)


# --------------------------- one-time weight prepare ---------------------------

def prepare_vctree_params(params):
    """One-time weight preprocessing (pad to lane multiples, split post_cat
    along its concat input dim, fuse post_emb halves side by side, cast matmul
    operands to bf16).  Call once; reuse for every forward."""
    hidden = params["hidden_dim"]
    in_ch = params["w_edge_ctx"].shape[0]
    pool = params["w_post_cat"].shape[1]
    mlp = params["w_up_dim"].shape[0]
    num_rel = params["w_ctx_compress"].shape[1]

    inp = _round_up(in_ch, LANE)
    hp = _round_up(hidden, LANE)
    up = _round_up(mlp, LANE)
    pp = _round_up(pool, LANE)
    cp = _round_up(num_rel, LANE)

    # kernel A: fused (stand-in) edge_ctx projection + post_emb
    w_pe_h = _pad2d(params["w_post_emb"][:, :hidden], hp, hp)
    w_pe_t = _pad2d(params["w_post_emb"][:, hidden:], hp, hp)
    kernel_a = {
        "w_ec": _pad2d(params["w_edge_ctx"], inp, hp).astype(jnp.bfloat16),
        "b_ec": _pad2d(params["b_edge_ctx"], 1, hp),
        "w_pe": jnp.concatenate([w_pe_h, w_pe_t], axis=1).astype(jnp.bfloat16),
        "b_pe_h": _pad2d(params["b_post_emb"][:, :hidden], 1, hp),
        "b_pe_t": _pad2d(params["b_post_emb"][:, hidden:], 1, hp),
    }

    # kernel B: post_cat split (no (R, 2H) concat) + up_dim + ctx_compress
    kernel_b = {
        "w_cat_h": _pad2d(params["w_post_cat"][:hidden, :], hp, pp).astype(jnp.bfloat16),
        "w_cat_t": _pad2d(params["w_post_cat"][hidden:, :], hp, pp).astype(jnp.bfloat16),
        "b_cat": _pad2d(params["b_post_cat"], 1, pp),
        "w_up": _pad2d(params["w_up_dim"], up, pp).astype(jnp.bfloat16),
        "b_up": _pad2d(params["b_up_dim"], 1, pp),
        "w_ctx": _pad2d(params["w_ctx_compress"], pp, cp).astype(jnp.bfloat16),
        "b_ctx": _pad2d(params["b_ctx_compress"], 1, cp),
    }

    prepared = dict(params)
    prepared["kernel_a"] = kernel_a
    prepared["kernel_b"] = kernel_b
    prepared["num_rel_cls_out"] = num_rel
    return prepared


# ------------------------------ pallas_call wrappers ---------------------------

def post_emb_pallas(roi_features, ka):
    """Returns (head_rep, tail_rep) as (N, Hp) bf16; padded feature columns are
    exactly zero (relu(0 + 0))."""
    cfg = _chip_config()
    n = roi_features.shape[0]
    inp = ka["w_ec"].shape[0]
    hp = ka["w_pe"].shape[1] // 2
    tile = min(cfg["tile_rows"], _round_up(n, SUBLANE))
    n_pad = _round_up(n, tile)

    x = _pad2d(roi_features, n_pad, inp).astype(jnp.bfloat16)
    args = (x, ka["w_ec"], ka["b_ec"], ka["w_pe"], ka["b_pe_h"], ka["b_pe_t"])

    def build(weight_mode):
        return pl.pallas_call(
            _edge_post_emb_kernel,
            grid=(n_pad // tile,),
            in_specs=[_row_spec(tile, inp),
                      _fix_spec(inp, hp, weight_mode),
                      _fix_spec(1, hp, weight_mode),
                      _fix_spec(hp, 2 * hp, weight_mode),
                      _fix_spec(1, hp, weight_mode),
                      _fix_spec(1, hp, weight_mode)],
            out_specs=(_row_spec(tile, hp), _row_spec(tile, hp)),
            out_shape=(jax.ShapeDtypeStruct((n_pad, hp), jnp.bfloat16),
                       jax.ShapeDtypeStruct((n_pad, hp), jnp.bfloat16)),
            compiler_params=pltpu.CompilerParams(
                dimension_semantics=("parallel",),
                vmem_limit_bytes=cfg["vmem_limit_bytes"]),
        )

    try:
        head, tail = build(pl.Buffered(1))(*args)
    except Exception:
        # Buffered(1) unsupported on this jax version -> default buffering.
        head, tail = build(None)(*args)
    return head[:n], tail[:n]


def rel_dists_pallas(head_g, tail_g, union_feats, frq_dists, kb, num_rel_cls):
    """head_g / tail_g: (R, Hp) bf16 already lane-padded (extra cols are zero)."""
    cfg = _chip_config()
    r = head_g.shape[0]
    hp = head_g.shape[1]
    up = kb["w_up"].shape[0]
    pp = kb["w_ctx"].shape[0]
    cp = kb["w_ctx"].shape[1]

    tile = min(cfg["tile_rows"], _round_up(r, SUBLANE))
    r_pad = _round_up(r, tile)

    head_p = _pad2d(head_g, r_pad, hp)
    tail_p = _pad2d(tail_g, r_pad, hp)
    union_p = _pad2d(union_feats, r_pad, up).astype(jnp.bfloat16)
    frq_p = _pad2d(frq_dists, r_pad, cp)

    kernel = functools.partial(_rel_dists_kernel, mul_bf16=cfg["mul_bf16"])
    args = (head_p, tail_p, union_p, frq_p,
            kb["w_cat_h"], kb["w_cat_t"], kb["b_cat"],
            kb["w_up"], kb["b_up"], kb["w_ctx"], kb["b_ctx"])

    def build(weight_mode):
        return pl.pallas_call(
            kernel,
            grid=(r_pad // tile,),
            in_specs=[_row_spec(tile, hp), _row_spec(tile, hp),
                      _row_spec(tile, up), _row_spec(tile, cp),
                      _fix_spec(hp, pp, weight_mode),
                      _fix_spec(hp, pp, weight_mode),
                      _fix_spec(1, pp, weight_mode),
                      _fix_spec(up, pp, weight_mode),
                      _fix_spec(1, pp, weight_mode),
                      _fix_spec(pp, cp, weight_mode),
                      _fix_spec(1, cp, weight_mode)],
            out_specs=_row_spec(tile, cp),
            out_shape=jax.ShapeDtypeStruct((r_pad, cp), jnp.float32),
            compiler_params=pltpu.CompilerParams(
                dimension_semantics=("parallel",),
                vmem_limit_bytes=cfg["vmem_limit_bytes"]),
        )

    try:
        out = build(pl.Buffered(1))(*args)
    except Exception:
        out = build(None)(*args)
    return out[:r, :num_rel_cls]


# ------------------------------- module wrapper --------------------------------

def vctree_predictor_forward(prepared, num_objs, num_rels, rel_pair_idxs,
                             roi_features, union_features):
    """Inference-mode forward of VCTreePredictor (add_losses == {})."""
    num_obj_cls = prepared["num_obj_cls"]

    # TODO(synk): VCTreeLSTMContext (word embeddings + binary-tree construction
    # + bidirectional TreeLSTM) has no clean single-kernel Pallas equivalent;
    # obj_dists / obj_preds come from a deterministic linear stand-in and the
    # stand-in edge_ctx projection is fused into Pallas kernel A below.
    obj_dists = roi_features @ prepared["w_obj_dec"] + prepared["b_obj_dec"]   # (N, num_obj_cls)
    obj_preds = jnp.argmax(obj_dists[:, 1:], axis=-1) + 1                      # skip background

    # --- edge_ctx + post_emb + ReLU + head/tail split (Pallas kernel A) ---
    head_rep, tail_rep = post_emb_pallas(roi_features, prepared["kernel_a"])   # (N, Hp) bf16

    # --- per-image pair gather (glue, plain JAX) ---
    offsets = [0]
    for n in num_objs[:-1]:
        offsets.append(offsets[-1] + n)
    global_pairs = jnp.concatenate(
        [pidx + off for pidx, off in zip(rel_pair_idxs, offsets)], axis=0)     # (R, 2)

    head_gather = head_rep[global_pairs[:, 0]]                                 # (R, Hp) bf16
    tail_gather = tail_rep[global_pairs[:, 1]]                                 # (R, Hp) bf16

    pair_pred = jnp.stack([obj_preds[global_pairs[:, 0]],
                           obj_preds[global_pairs[:, 1]]], axis=1)             # (R, 2)
    frq_idx = pair_pred[:, 0] * num_obj_cls + pair_pred[:, 1]
    frq_dists = prepared["freq_bias_table"][frq_idx]                           # (R, num_rel_cls)

    # --- post_cat / up_dim / ctx_compress / +freq_bias (Pallas kernel B) ---
    rel_dists = rel_dists_pallas(head_gather, tail_gather, union_features,
                                 frq_dists, prepared["kernel_b"],
                                 prepared["num_rel_cls_out"])

    # --- split per image ---
    obj_dists_list, rel_dists_list = [], []
    o = 0
    for n in num_objs:
        obj_dists_list.append(obj_dists[o:o + n]); o += n
    r = 0
    for n in num_rels:
        rel_dists_list.append(rel_dists[r:r + n]); r += n

    # TODO(synk): training-time binary BCE loss over rel_binarys omitted
    # (eval-mode forward; add_losses == {}).
    add_losses = {}
    return obj_dists_list, rel_dists_list, add_losses


# ---------------------------- pure-JAX f32 reference ----------------------------

def _rel_dists_ref(params, num_objs, rel_pair_idxs, roi_features, union_features):
    hidden = params["hidden_dim"]
    num_obj_cls = params["num_obj_cls"]
    obj_dists = roi_features @ params["w_obj_dec"] + params["b_obj_dec"]
    obj_preds = jnp.argmax(obj_dists[:, 1:], axis=-1) + 1
    edge_ctx = roi_features @ params["w_edge_ctx"] + params["b_edge_ctx"]
    edge_rep = jax.nn.relu(edge_ctx @ params["w_post_emb"] + params["b_post_emb"])
    head_rep, tail_rep = edge_rep[:, :hidden], edge_rep[:, hidden:]
    offsets = [0]
    for n in num_objs[:-1]:
        offsets.append(offsets[-1] + n)
    pairs = jnp.concatenate([p + o for p, o in zip(rel_pair_idxs, offsets)], axis=0)
    prod_rep = jnp.concatenate([head_rep[pairs[:, 0]], tail_rep[pairs[:, 1]]], axis=-1)
    prod_rep = prod_rep @ params["w_post_cat"] + params["b_post_cat"]
    uni = union_features @ params["w_up_dim"] + params["b_up_dim"]
    ctx = (prod_rep * uni) @ params["w_ctx_compress"] + params["b_ctx_compress"]
    frq_idx = obj_preds[pairs[:, 0]] * num_obj_cls + obj_preds[pairs[:, 1]]
    return ctx + params["freq_bias_table"][frq_idx]


# ------------------------------------ main --------------------------------------

if __name__ == "__main__":
    key = jax.random.PRNGKey(0)

    # Small, self-consistent config.
    IN_CHANNELS = 40          # roi feature dim fed to context layer
    HIDDEN = 32               # CONTEXT_HIDDEN_DIM
    POOLING = 64              # CONTEXT_POOLING_DIM
    MLP_HEAD = 48             # ROI_BOX_HEAD.MLP_HEAD_DIM != POOLING -> up_dim used
    NUM_OBJ_CLS = 10
    NUM_REL_CLS = 16
    num_objs = [5, 3]         # 2 images
    num_rels = [4, 2]
    N = sum(num_objs)
    R = sum(num_rels)

    keys = jax.random.split(key, 16)

    def lin(k, fan_in, fan_out, scale=None):
        s = scale if scale is not None else (1.0 / fan_in) ** 0.5
        kw, kb = jax.random.split(k)
        w = jax.random.normal(kw, (fan_in, fan_out), jnp.float32) * s
        b = jax.random.normal(kb, (1, fan_out), jnp.float32) * 0.01
        return w, b

    params = {"hidden_dim": HIDDEN, "num_obj_cls": NUM_OBJ_CLS}
    # stand-in context layer params
    params["w_obj_dec"], params["b_obj_dec"] = lin(keys[0], IN_CHANNELS, NUM_OBJ_CLS)
    params["w_edge_ctx"], params["b_edge_ctx"] = lin(keys[1], IN_CHANNELS, HIDDEN)
    # predictor params (shapes from __init__)
    params["w_post_emb"], params["b_post_emb"] = lin(
        keys[2], HIDDEN, 2 * HIDDEN, scale=10.0 * (1.0 / HIDDEN) ** 0.5)
    params["w_post_cat"], params["b_post_cat"] = lin(keys[3], 2 * HIDDEN, POOLING)
    params["w_up_dim"], params["b_up_dim"] = lin(keys[4], MLP_HEAD, POOLING)
    params["w_ctx_compress"], params["b_ctx_compress"] = lin(keys[5], POOLING, NUM_REL_CLS)
    # FrequencyBias embedding table: (num_obj_cls^2, num_rel_cls)
    params["freq_bias_table"] = jax.random.normal(
        keys[6], (NUM_OBJ_CLS * NUM_OBJ_CLS, NUM_REL_CLS), jnp.float32) * 0.1

    # Inputs.
    roi_features = jax.random.normal(keys[7], (N, IN_CHANNELS), jnp.float32)
    union_features = jax.random.normal(keys[8], (R, MLP_HEAD), jnp.float32)
    rel_pair_idxs = []
    for i, (no, nr) in enumerate(zip(num_objs, num_rels)):
        rel_pair_idxs.append(
            jax.random.randint(keys[9 + i], (nr, 2), 0, no, dtype=jnp.int32))

    # One-time weight preprocessing (hoisted out of the forward path).
    prepared = prepare_vctree_params(params)

    obj_dists, rel_dists, add_losses = vctree_predictor_forward(
        prepared, num_objs, num_rels, rel_pair_idxs, roi_features, union_features)

    for t in obj_dists + rel_dists:
        jax.block_until_ready(t)

    # sanity: shapes match the torch module's outputs
    assert [t.shape for t in obj_dists] == [(n, NUM_OBJ_CLS) for n in num_objs]
    assert [t.shape for t in rel_dists] == [(n, NUM_REL_CLS) for n in num_rels]
    assert add_losses == {}
    assert all(bool(jnp.all(jnp.isfinite(t))) for t in rel_dists)

    # tolerance check vs pure-JAX f32 reference (bf16 matmul path)
    ref = np.asarray(_rel_dists_ref(params, num_objs, rel_pair_idxs,
                                    roi_features, union_features))
    got = np.asarray(jnp.concatenate(rel_dists, axis=0))
    scale = max(float(np.max(np.abs(ref))), 1.0)
    max_err = float(np.max(np.abs(got - ref)))
    assert max_err <= 0.08 * scale + 1e-3, f"mismatch vs f32 reference: {max_err}"

    print("KERNEL_OK")
</pallas_src>

<mosaic_0001>
module attributes {stable_mosaic.version = 11 : i64} {
  func.func @_edge_post_emb_kernel(%arg0: i32, %arg1: memref<8x128xbf16, #tpu.memory_space<vmem>>, %arg2: memref<128x128xbf16, #tpu.memory_space<vmem>>, %arg3: memref<1x128xf32, #tpu.memory_space<vmem>>, %arg4: memref<128x256xbf16, #tpu.memory_space<vmem>>, %arg5: memref<1x128xf32, #tpu.memory_space<vmem>>, %arg6: memref<1x128xf32, #tpu.memory_space<vmem>>, %arg7: memref<8x128xbf16, #tpu.memory_space<vmem>>, %arg8: memref<8x128xbf16, #tpu.memory_space<vmem>>) attributes {dimension_semantics = [#tpu.dimension_semantics<parallel>], iteration_bounds = array<i64: 1>, scalar_prefetch = 0 : i64, scratch_operands = 0 : i64, tpu.core_type = #tpu.core_type<tc>, window_params = [{transform_indices = @transform_0, window_bounds = array<i64: 8, 128>}, {pipeline_mode = #tpu.pipeline_mode<synchronous>, transform_indices = @transform_1, window_bounds = array<i64: 128, 128>}, {pipeline_mode = #tpu.pipeline_mode<synchronous>, transform_indices = @transform_2, window_bounds = array<i64: 1, 128>}, {pipeline_mode = #tpu.pipeline_mode<synchronous>, transform_indices = @transform_3, window_bounds = array<i64: 128, 256>}, {pipeline_mode = #tpu.pipeline_mode<synchronous>, transform_indices = @transform_4, window_bounds = array<i64: 1, 128>}, {pipeline_mode = #tpu.pipeline_mode<synchronous>, transform_indices = @transform_5, window_bounds = array<i64: 1, 128>}, {transform_indices = @transform_6, window_bounds = array<i64: 8, 128>}, {transform_indices = @transform_7, window_bounds = array<i64: 8, 128>}]} {
    %c0 = arith.constant 0 : index
    %c0_0 = arith.constant 0 : index
    %0 = vector.load %arg1[%c0, %c0_0] : memref<8x128xbf16, #tpu.memory_space<vmem>>, vector<8x128xbf16>
    %c0_1 = arith.constant 0 : index
    %c0_2 = arith.constant 0 : index
    %1 = vector.load %arg2[%c0_1, %c0_2] : memref<128x128xbf16, #tpu.memory_space<vmem>>, vector<128x128xbf16>
    %cst = arith.constant dense<0.000000e+00> : vector<8x128xf32>
    %2 = tpu.matmul %0, %1, %cst {dimension_numbers = #tpu.dot_dimension_numbers<[1], [0], [0], [1], [0, 0, 1, 1], [], []>} : vector<8x128xbf16>, vector<128x128xbf16>, vector<8x128xf32> -> vector<8x128xf32>
    %c0_3 = arith.constant 0 : index
    %c0_4 = arith.constant 0 : index
    %3 = vector.load %arg3[%c0_3, %c0_4] : memref<1x128xf32, #tpu.memory_space<vmem>>, vector<1x128xf32>
    %4 = vector.broadcast %3 : vector<1x128xf32> to vector<8x128xf32>
    %5 = arith.addf %2, %4 : vector<8x128xf32>
    %6 = arith.truncf %5 : vector<8x128xf32> to vector<8x128xbf16>
    %c0_5 = arith.constant 0 : index
    %c0_6 = arith.constant 0 : index
    %7 = vector.load %arg4[%c0_5, %c0_6] : memref<128x256xbf16, #tpu.memory_space<vmem>>, vector<128x256xbf16>
    %cst_7 = arith.constant dense<0.000000e+00> : vector<8x256xf32>
    %8 = tpu.matmul %6, %7, %cst_7 {dimension_numbers = #tpu.dot_dimension_numbers<[1], [0], [0], [1], [0, 0, 1, 1], [], []>} : vector<8x128xbf16>, vector<128x256xbf16>, vector<8x256xf32> -> vector<8x256xf32>
    %9 = vector.extract_strided_slice %8 {offsets = [0, 0], sizes = [8, 128], strides = [1, 1]} : vector<8x256xf32> to vector<8x128xf32>
    %c0_8 = arith.constant 0 : index
    %c0_9 = arith.constant 0 : index
    %10 = vector.load %arg5[%c0_8, %c0_9] : memref<1x128xf32, #tpu.memory_space<vmem>>, vector<1x128xf32>
    %11 = vector.broadcast %10 : vector<1x128xf32> to vector<8x128xf32>
    %12 = arith.addf %9, %11 : vector<8x128xf32>
    %cst_10 = arith.constant 0.000000e+00 : f32
    %13 = vector.broadcast %cst_10 : f32 to vector<8x128xf32>
    %14 = arith.maximumf %12, %13 : vector<8x128xf32>
    %15 = arith.truncf %14 : vector<8x128xf32> to vector<8x128xbf16>
    %c0_11 = arith.constant 0 : index
    %c0_12 = arith.constant 0 : index
    %16 = vector.load %arg7[%c0_11, %c0_12] : memref<8x128xbf16, #tpu.memory_space<vmem>>, vector<8x128xbf16>
    tpu.vector_store %arg7[%c0_11, %c0_12], %15 {strides = array<i32>} : memref<8x128xbf16, #tpu.memory_space<vmem>>, vector<8x128xbf16>,
    %17 = vector.extract_strided_slice %8 {offsets = [0, 128], sizes = [8, 128], strides = [1, 1]} : vector<8x256xf32> to vector<8x128xf32>
    %c0_13 = arith.constant 0 : index
    %c0_14 = arith.constant 0 : index
    %18 = vector.load %arg6[%c0_13, %c0_14] : memref<1x128xf32, #tpu.memory_space<vmem>>, vector<1x128xf32>
    %19 = vector.broadcast %18 : vector<1x128xf32> to vector<8x128xf32>
    %20 = arith.addf %17, %19 : vector<8x128xf32>
    %cst_15 = arith.constant 0.000000e+00 : f32
    %21 = vector.broadcast %cst_15 : f32 to vector<8x128xf32>
    %22 = arith.maximumf %20, %21 : vector<8x128xf32>
    %23 = arith.truncf %22 : vector<8x128xf32> to vector<8x128xbf16>
    %c0_16 = arith.constant 0 : index
    %c0_17 = arith.constant 0 : index
    %24 = vector.load %arg8[%c0_16, %c0_17] : memref<8x128xbf16, #tpu.memory_space<vmem>>, vector<8x128xbf16>
    tpu.vector_store %arg8[%c0_16, %c0_17], %23 {strides = array<i32>} : memref<8x128xbf16, #tpu.memory_space<vmem>>, vector<8x128xbf16>,
    return
  }
  func.func @transform_0(%arg0: i32) -> (i32, i32) {
    %c0_i32 = arith.constant 0 : i32
    %c0_i32_0 = arith.constant 0 : i32
    return %arg0, %c0_i32 : i32, i32
  }
  func.func @transform_1(%arg0: i32) -> (i32, i32) {
    %c0_i32 = arith.constant 0 : i32
    %c0_i32_0 = arith.constant 0 : i32
    %c0_i32_1 = arith.constant 0 : i32
    return %c0_i32, %c0_i32_0 : i32, i32
  }
  func.func @transform_2(%arg0: i32) -> (i32, i32) {
    %c0_i32 = arith.constant 0 : i32
    %c0_i32_0 = arith.constant 0 : i32
    %c0_i32_1 = arith.constant 0 : i32
    return %c0_i32, %c0_i32_0 : i32, i32
  }
  func.func @transform_3(%arg0: i32) -> (i32, i32) {
    %c0_i32 = arith.constant 0 : i32
    %c0_i32_0 = arith.constant 0 : i32
    %c0_i32_1 = arith.constant 0 : i32
    return %c0_i32, %c0_i32_0 : i32, i32
  }
  func.func @transform_4(%arg0: i32) -> (i32, i32) {
    %c0_i32 = arith.constant 0 : i32
    %c0_i32_0 = arith.constant 0 : i32
    %c0_i32_1 = arith.constant 0 : i32
    return %c0_i32, %c0_i32_0 : i32, i32
  }
  func.func @transform_5(%arg0: i32) -> (i32, i32) {
    %c0_i32 = arith.constant 0 : i32
    %c0_i32_0 = arith.constant 0 : i32
    %c0_i32_1 = arith.constant 0 : i32
    return %c0_i32, %c0_i32_0 : i32, i32
  }
  func.func @transform_6(%arg0: i32) -> (i32, i32) {
    %c0_i32 = arith.constant 0 : i32
    %c0_i32_0 = arith.constant 0 : i32
    return %arg0, %c0_i32 : i32, i32
  }
  func.func @transform_7(%arg0: i32) -> (i32, i32) {
    %c0_i32 = arith.constant 0 : i32
    %c0_i32_0 = arith.constant 0 : i32
    return %arg0, %c0_i32 : i32, i32
  }
}

module attributes {stable_mosaic.version = 11 : i64} {
  func.func @_edge_post_emb_kernel(%arg0: i32, %arg1: memref<8x128xbf16, #tpu.memory_space<vmem>>, %arg2: memref<128x128xbf16, #tpu.memory_space<vmem>>, %arg3: memref<1x128xf32, #tpu.memory_space<vmem>>, %arg4: memref<128x256xbf16, #tpu.memory_space<vmem>>, %arg5: memref<1x128xf32, #tpu.memory_space<vmem>>, %arg6: memref<1x128xf32, #tpu.memory_space<vmem>>, %arg7: memref<8x128xbf16, #tpu.memory_space<vmem>>, %arg8: memref<8x128xbf16, #tpu.memory_space<vmem>>) attributes {dimension_semantics = [#tpu.dimension_semantics<parallel>], iteration_bounds = array<i64: 1>, scalar_prefetch = 0 : i64, scratch_operands = 0 : i64, tpu.core_type = #tpu.core_type<tc>, window_params = [{transform_indices = @transform_0, window_bounds = array<i64: 8, 128>}, {pipeline_mode = #tpu.pipeline_mode<synchronous>, transform_indices = @transform_1, window_bounds = array<i64: 128, 128>}, {pipeline_mode = #tpu.pipeline_mode<synchronous>, transform_indices = @transform_2, window_bounds = array<i64: 1, 128>}, {pipeline_mode = #tpu.pipeline_mode<synchronous>, transform_indices = @transform_3, window_bounds = array<i64: 128, 256>}, {pipeline_mode = #tpu.pipeline_mode<synchronous>, transform_indices = @transform_4, window_bounds = array<i64: 1, 128>}, {pipeline_mode = #tpu.pipeline_mode<synchronous>, transform_indices = @transform_5, window_bounds = array<i64: 1, 128>}, {transform_indices = @transform_6, window_bounds = array<i64: 8, 128>}, {transform_indices = @transform_7, window_bounds = array<i64: 8, 128>}]} {
    %c0 = arith.constant 0 : index
    %c0_0 = arith.constant 0 : index
    %0 = vector.load %arg1[%c0, %c0_0] : memref<8x128xbf16, #tpu.memory_space<vmem>>, vector<8x128xbf16>
    %c0_1 = arith.constant 0 : index
    %c0_2 = arith.constant 0 : index
    %1 = vector.load %arg2[%c0_1, %c0_2] : memref<128x128xbf16, #tpu.memory_space<vmem>>, vector<128x128xbf16>
    %cst = arith.constant dense<0.000000e+00> : vector<8x128xf32>
    %2 = tpu.matmul %0, %1, %cst {dimension_numbers = #tpu.dot_dimension_numbers<[1], [0], [0], [1], [0, 0, 1, 1], [], []>} : vector<8x128xbf16>, vector<128x128xbf16>, vector<8x128xf32> -> vector<8x128xf32>
    %c0_3 = arith.constant 0 : index
    %c0_4 = arith.constant 0 : index
    %3 = vector.load %arg3[%c0_3, %c0_4] : memref<1x128xf32, #tpu.memory_space<vmem>>, vector<1x128xf32>
    %4 = vector.broadcast %3 : vector<1x128xf32> to vector<8x128xf32>
    %5 = arith.addf %2, %4 : vector<8x128xf32>
    %6 = arith.truncf %5 : vector<8x128xf32> to vector<8x128xbf16>
    %c0_5 = arith.constant 0 : index
    %c0_6 = arith.constant 0 : index
    %7 = vector.load %arg4[%c0_5, %c0_6] : memref<128x256xbf16, #tpu.memory_space<vmem>>, vector<128x256xbf16>
    %cst_7 = arith.constant dense<0.000000e+00> : vector<8x256xf32>
    %8 = tpu.matmul %6, %7, %cst_7 {dimension_numbers = #tpu.dot_dimension_numbers<[1], [0], [0], [1], [0, 0, 1, 1], [], []>} : vector<8x128xbf16>, vector<128x256xbf16>, vector<8x256xf32> -> vector<8x256xf32>
    %9 = vector.extract_strided_slice %8 {offsets = [0, 0], sizes = [8, 128], strides = [1, 1]} : vector<8x256xf32> to vector<8x128xf32>
    %c0_8 = arith.constant 0 : index
    %c0_9 = arith.constant 0 : index
    %10 = vector.load %arg5[%c0_8, %c0_9] : memref<1x128xf32, #tpu.memory_space<vmem>>, vector<1x128xf32>
    %11 = vector.broadcast %10 : vector<1x128xf32> to vector<8x128xf32>
    %12 = arith.addf %9, %11 : vector<8x128xf32>
    %cst_10 = arith.constant 0.000000e+00 : f32
    %13 = vector.broadcast %cst_10 : f32 to vector<8x128xf32>
    %14 = arith.maximumf %12, %13 : vector<8x128xf32>
    %15 = arith.truncf %14 : vector<8x128xf32> to vector<8x128xbf16>
    %c0_11 = arith.constant 0 : index
    %c0_12 = arith.constant 0 : index
    %16 = vector.load %arg7[%c0_11, %c0_12] : memref<8x128xbf16, #tpu.memory_space<vmem>>, vector<8x128xbf16>
    tpu.vector_store %arg7[%c0_11, %c0_12], %15 {strides = array<i32>} : memref<8x128xbf16, #tpu.memory_space<vmem>>, vector<8x128xbf16>,
    %17 = vector.extract_strided_slice %8 {offsets = [0, 128], sizes = [8, 128], strides = [1, 1]} : vector<8x256xf32> to vector<8x128xf32>
    %c0_13 = arith.constant 0 : index
    %c0_14 = arith.constant 0 : index
    %18 = vector.load %arg6[%c0_13, %c0_14] : memref<1x128xf32, #tpu.memory_space<vmem>>, vector<1x128xf32>
    %19 = vector.broadcast %18 : vector<1x128xf32> to vector<8x128xf32>
    %20 = arith.addf %17, %19 : vector<8x128xf32>
    %cst_15 = arith.constant 0.000000e+00 : f32
    %21 = vector.broadcast %cst_15 : f32 to vector<8x128xf32>
    %22 = arith.maximumf %20, %21 : vector<8x128xf32>
    %23 = arith.truncf %22 : vector<8x128xf32> to vector<8x128xbf16>
    %c0_16 = arith.constant 0 : index
    %c0_17 = arith.constant 0 : index
    %24 = vector.load %arg8[%c0_16, %c0_17] : memref<8x128xbf16, #tpu.memory_space<vmem>>, vector<8x128xbf16>
    tpu.vector_store %arg8[%c0_16, %c0_17], %23 {strides = array<i32>} : memref<8x128xbf16, #tpu.memory_space<vmem>>, vector<8x128xbf16>,
    return
  }
  func.func @transform_0(%arg0: i32) -> (i32, i32) {
    %c0_i32 = arith.constant 0 : i32
    %c0_i32_0 = arith.constant 0 : i32
    return %arg0, %c0_i32 : i32, i32
  }
  func.func @transform_1(%arg0: i32) -> (i32, i32) {
    %c0_i32 = arith.constant 0 : i32
    %c0_i32_0 = arith.constant 0 : i32
    %c0_i32_1 = arith.constant 0 : i32
    return %c0_i32, %c0_i32_0 : i32, i32
  }
  func.func @transform_2(%arg0: i32) -> (i32, i32) {
    %c0_i32 = arith.constant 0 : i32
    %c0_i32_0 = arith.constant 0 : i32
    %c0_i32_1 = arith.constant 0 : i32
    return %c0_i32, %c0_i32_0 : i32, i32
  }
  func.func @transform_3(%arg0: i32) -> (i32, i32) {
    %c0_i32 = arith.constant 0 : i32
    %c0_i32_0 = arith.constant 0 : i32
    %c0_i32_1 = arith.constant 0 : i32
    return %c0_i32, %c0_i32_0 : i32, i32
  }
  func.func @transform_4(%arg0: i32) -> (i32, i32) {
    %c0_i32 = arith.constant 0 : i32
    %c0_i32_0 = arith.constant 0 : i32
    %c0_i32_1 = arith.constant 0 : i32
    return %c0_i32, %c0_i32_0 : i32, i32
  }
  func.func @transform_5(%arg0: i32) -> (i32, i32) {
    %c0_i32 = arith.constant 0 : i32
    %c0_i32_0 = arith.constant 0 : i32
    %c0_i32_1 = arith.constant 0 : i32
    return %c0_i32, %c0_i32_0 : i32, i32
  }
  func.func @transform_6(%arg0: i32) -> (i32, i32) {
    %c0_i32 = arith.constant 0 : i32
    %c0_i32_0 = arith.constant 0 : i32
    return %arg0, %c0_i32 : i32, i32
  }
  func.func @transform_7(%arg0: i32) -> (i32, i32) {
    %c0_i32 = arith.constant 0 : i32
    %c0_i32_0 = arith.constant 0 : i32
    return %arg0, %c0_i32 : i32, i32
  }
}

</mosaic_0001>

<llo_original>
// kernel: tpu_custom_call.1
$region0: #{tpu_custom_call.1}
  #allocation0 [shape = 'u32[]', space=smem, size = 0x4, offset = 0x4, fixed_abs, tag = 'smem constant byte address 0x4 - core index']
  #allocation1 [shape = 'u32[144,128]{1,0:T(1,128)}', space=vmem, size = 0x12000, scoped, tag = 'internal scratch']
  %s0 = inlined_call_operand.hbm [shape: bf16[8,128], index: 0, kind: input, shape index: {}]
  %s1 = inlined_call_operand.hbm [shape: bf16[128,128], index: 1, kind: input, shape index: {}]
  %s2 = inlined_call_operand.hbm [shape: f32[1,128], index: 2, kind: input, shape index: {}]
  %s3 = inlined_call_operand.hbm [shape: bf16[128,256], index: 3, kind: input, shape index: {}]
  %s4 = inlined_call_operand.hbm [shape: f32[1,128], index: 4, kind: input, shape index: {}]
  %s5 = inlined_call_operand.hbm [shape: f32[1,128], index: 5, kind: input, shape index: {}]
  %s6 = inlined_call_operand.hbm [shape: bf16[8,128], index: 6, kind: output, shape index: {0}]
  %s7 = inlined_call_operand.hbm [shape: bf16[8,128], index: 7, kind: output, shape index: {1}]
  %8 = xla_tuple %s6, %s7
  %s9 = sld [smem:[#allocation0]]
  $region66: #{tpu_custom_call.1} parent=0
    _
  %s11 = ssub.s32 1, %s9
  %s12 = scalar_select 0, %s11, %s9
  $region1: #{tpu_custom_call.1} parent=0
    #allocation2 [shape = 'u8[2048]{0}', space=vmem, size = 0x800, scoped, tag = 'input window, operand 0, single buffered']
    #allocation3 [shape = 's32[1]{0}', space=sflag, size = 0x4, scoped, tag = 'scoped memory for tpu_custom_call.1']
    #allocation4 [shape = 's32[1]{0}', space=sflag, size = 0x4, scoped, tag = 'scoped memory for tpu_custom_call.1']
    #allocation5 [shape = 'u8[32768]{0}', space=vmem, size = 0x8000, scoped, tag = 'input window, operand 1, single buffered']
    #allocation6 [shape = 's32[1]{0}', space=sflag, size = 0x4, scoped, tag = 'scoped memory for tpu_custom_call.1']
    #allocation7 [shape = 'u8[512]{0}', space=vmem, size = 0x400, scoped, tag = 'input window, operand 2, single buffered']
    #allocation8 [shape = 'u8[65536]{0}', space=vmem, size = 0x10000, scoped, tag = 'input window, operand 3, single buffered']
    #allocation9 [shape = 's32[1]{0}', space=sflag, size = 0x4, scoped, tag = 'scoped memory for tpu_custom_call.1']
    #allocation10 [shape = 'u8[512]{0}', space=vmem, size = 0x400, scoped, tag = 'input window, operand 4, single buffered']
    #allocation11 [shape = 'u8[512]{0}', space=vmem, size = 0x400, scoped, tag = 'input window, operand 5, single buffered']
    #allocation12 [shape = 's32[1]{0}', space=sflag, size = 0x4, scoped, tag = 'scoped memory for tpu_custom_call.1']
    #allocation13 [shape = 'u8[2048]{0}', space=vmem, size = 0x800, scoped, tag = 'output window, operand 0, single buffered']
    #allocation14 [shape = 'u8[2048]{0}', space=vmem, size = 0x800, scoped, tag = 'output window, operand 1, single buffered']
    #allocation15 [shape = 's32[1]{0}', space=sflag, size = 0x4, scoped, tag = 'scoped memory for tpu_custom_call.1']
    %13 = vsyncpa [#allocation3], 0
    %14 = vsyncpa [#allocation6], 0
    %15 = vsyncpa [#allocation9], 0
    %16 = vsyncpa [#allocation12], 0
    %17 = vsyncpa [#allocation4], 0
    %18 = vsyncpa [#allocation15], 0
    // Predicated region
    $region2: #{tpu_custom_call.1} parent=1 // pred_check
      _
    $region3: #{tpu_custom_call.1} parent=1 // pred_check_branch
      %20 = sbr.rel (0) target = $region5
    $region4: #{tpu_custom_call.1} parent=1 // pred_region
      %s22 = ssub.s32 64, 64
      %23 = vsyncadd [#allocation3], %s22
      %s25 = sshll.u32 [#allocation2], 4
      %s26 = int_to_ptr.vmem [resolvable:$true] %s25
      %28 = dma.hbm_to_vmem [thread:$0]  %s0, 64, %s26, [#allocation3]
    $region5: #{tpu_custom_call.1} parent=1 // pred_fallthru
      _
    // Predicated region
    $region6: #{tpu_custom_call.1} parent=1 // pred_check
      _
    $region7: #{tpu_custom_call.1} parent=1 // pred_check_branch
      %30 = sbr.rel (0) target = $region9
    $region8: #{tpu_custom_call.1} parent=1 // pred_region
      %s32 = ssub.s32 1024, 1024
      %33 = vsyncadd [#allocation6], %s32
      %s34 = sshll.u32 [#allocation5], 4
      %s35 = int_to_ptr.vmem [resolvable:$true] %s34
      %40 = dma.hbm_to_vmem [thread:$0]  %s1, 1024, %s35, [#allocation6], 64, 64, 4
    $region9: #{tpu_custom_call.1} parent=1 // pred_fallthru
      _
    // Predicated region
    $region10: #{tpu_custom_call.1} parent=1 // pred_check
      _
    $region11: #{tpu_custom_call.1} parent=1 // pred_check_branch
      %42 = sbr.rel (0) target = $region13
    $region12: #{tpu_custom_call.1} parent=1 // pred_region
      %s44 = ssub.s32 16, 16
      %45 = vsyncadd [#allocation6], %s44
      %s47 = sshll.u32 [#allocation7], 4
      %s48 = int_to_ptr.vmem [resolvable:$true] %s47
      %50 = dma.hbm_to_vmem [thread:$0]  %s2, 16, %s48, [#allocation6]
    $region13: #{tpu_custom_call.1} parent=1 // pred_fallthru
      _
    // Predicated region
    $region14: #{tpu_custom_call.1} parent=1 // pred_check
      _
    $region15: #{tpu_custom_call.1} parent=1 // pred_check_branch
      %52 = sbr.rel (0) target = $region17
    $region16: #{tpu_custom_call.1} parent=1 // pred_region
      %s54 = ssub.s32 2048, 2048
      %55 = vsyncadd [#allocation9], %s54
      %s56 = sshll.u32 [#allocation8], 4
      %s57 = int_to_ptr.vmem [resolvable:$true] %s56
      %62 = dma.hbm_to_vmem [thread:$0]  %s3, 2048, %s57, [#allocation9], 128, 128, 8
    $region17: #{tpu_custom_call.1} parent=1 // pred_fallthru
      _
    // Predicated region
    $region18: #{tpu_custom_call.1} parent=1 // pred_check
      _
    $region19: #{tpu_custom_call.1} parent=1 // pred_check_branch
      %64 = sbr.rel (0) target = $region21
    $region20: #{tpu_custom_call.1} parent=1 // pred_region
      %s66 = ssub.s32 16, 16
      %67 = vsyncadd [#allocation9], %s66
      %s69 = sshll.u32 [#allocation10], 4
      %s70 = int_to_ptr.vmem [resolvable:$true] %s69
      %72 = dma.hbm_to_vmem [thread:$0]  %s4, 16, %s70, [#allocation9]
    $region21: #{tpu_custom_call.1} parent=1 // pred_fallthru
      _
    // Predicated region
    $region22: #{tpu_custom_call.1} parent=1 // pred_check
      _
    $region23: #{tpu_custom_call.1} parent=1 // pred_check_branch
      %74 = sbr.rel (0) target = $region25
    $region24: #{tpu_custom_call.1} parent=1 // pred_region
      %s76 = ssub.s32 16, 16
      %77 = vsyncadd [#allocation12], %s76
      %s79 = sshll.u32 [#allocation11], 4
      %s80 = int_to_ptr.vmem [resolvable:$true] %s79
      %82 = dma.hbm_to_vmem [thread:$0]  %s5, 16, %s80, [#allocation12]
    $region25: #{tpu_custom_call.1} parent=1 // pred_fallthru
      _
    // Predicated region
    $region26: #{tpu_custom_call.1} parent=1 // pred_check
      _
    $region27: #{tpu_custom_call.1} parent=1 // pred_check_branch
      %84 = sbr.rel (0) target = $region29
    $region28: #{tpu_custom_call.1} parent=1 // pred_region
      %85 = dma.done [#allocation3], 64
    $region29: #{tpu_custom_call.1} parent=1 // pred_fallthru
      _
    // Predicated region
    $region30: #{tpu_custom_call.1} parent=1 // pred_check
      _
    $region31: #{tpu_custom_call.1} parent=1 // pred_check_branch
      %87 = sbr.rel (0) target = $region33
    $region32: #{tpu_custom_call.1} parent=1 // pred_region
      %88 = dma.done [#allocation6], 1024
    $region33: #{tpu_custom_call.1} parent=1 // pred_fallthru
      _
    // Predicated region
    $region34: #{tpu_custom_call.1} parent=1 // pred_check
      _
    $region35: #{tpu_custom_call.1} parent=1 // pred_check_branch
      %90 = sbr.rel (0) target = $region37
    $region36: #{tpu_custom_call.1} parent=1 // pred_region
      %91 = dma.done [#allocation6], 16
    $region37: #{tpu_custom_call.1} parent=1 // pred_fallthru
      _
    // Predicated region
    $region38: #{tpu_custom_call.1} parent=1 // pred_check
      _
    $region39: #{tpu_custom_call.1} parent=1 // pred_check_branch
      %93 = sbr.rel (0) target = $region41
    $region40: #{tpu_custom_call.1} parent=1 // pred_region
      %94 = dma.done [#allocation9], 2048
    $region41: #{tpu_custom_call.1} parent=1 // pred_fallthru
      _
    // Predicated region
    $region42: #{tpu_custom_call.1} parent=1 // pred_check
      _
    $region43: #{tpu_custom_call.1} parent=1 // pred_check_branch
      %96 = sbr.rel (0) target = $region45
    $region44: #{tpu_custom_call.1} parent=1 // pred_region
      %97 = dma.done [#allocation9], 16
    $region45: #{tpu_custom_call.1} parent=1 // pred_fallthru
      _
    // Predicated region
    $region46: #{tpu_custom_call.1} parent=1 // pred_check
      _
    $region47: #{tpu_custom_call.1} parent=1 // pred_check_branch
      %99 = sbr.rel (0) target = $region49
    $region48: #{tpu_custom_call.1} parent=1 // pred_region
      %100 = dma.done [#allocation12], 16
    $region49: #{tpu_custom_call.1} parent=1 // pred_fallthru
      _
    %v102 = vld [vmem:[#allocation2] sm:$0xf]
    %v103 = vld [vmem:[#allocation5] sm:$0xf]
    %v104 = vld [vmem:[#allocation5 + $0x4] sm:$0xf]
    %v105 = vld [vmem:[#allocation5 + $0x8] sm:$0xf]
    %v106 = vld [vmem:[#allocation5 + $0xc] sm:$0xf]
    %v107 = vld [vmem:[#allocation5 + $0x10] sm:$0xf]
    %v108 = vld [vmem:[#allocation5 + $0x14] sm:$0xf]
    %v109 = vld [vmem:[#allocation5 + $0x18] sm:$0xf]
    %v110 = vld [vmem:[#allocation5 + $0x1c] sm:$0xf]
    %v111 = vld [vmem:[#allocation5 + $0x20] sm:$0xf]
    %v112 = vld [vmem:[#allocation5 + $0x24] sm:$0xf]
    %v113 = vld [vmem:[#allocation5 + $0x28] sm:$0xf]
    %v114 = vld [vmem:[#allocation5 + $0x2c] sm:$0xf]
    %v115 = vld [vmem:[#allocation5 + $0x30] sm:$0xf]
    %v116 = vld [vmem:[#allocation5 + $0x34] sm:$0xf]
    %v117 = vld [vmem:[#allocation5 + $0x38] sm:$0xf]
    %v118 = vld [vmem:[#allocation5 + $0x3c] sm:$0xf]
    %v119 = vld [vmem:[#allocation7] sm:$0x1]
    %v121 = vlaneseq
    %v122 = vshrl.u32 %v121, 7
    %v123 = vsub.s32 0, %v122
    %v124 = vrot.slane %v119, %v123
    %v142 = vunpack.c.l.b16 %v103
    %v143 = vunpack.c.l.b16 %v104
    %v144 = vunpack.c.l.b16 %v105
    %v145 = vunpack.c.l.b16 %v106
    %v146 = vunpack.c.l.b16 %v107
    %v147 = vunpack.c.l.b16 %v108
    %v148 = vunpack.c.l.b16 %v109
    %v149 = vunpack.c.l.b16 %v110
    %v150 = vunpack.c.l.b16 %v111
    %v151 = vunpack.c.l.b16 %v112
    %v152 = vunpack.c.l.b16 %v113
    %v153 = vunpack.c.l.b16 %v114
    %v154 = vunpack.c.l.b16 %v115
    %v155 = vunpack.c.l.b16 %v116
    %v156 = vunpack.c.l.b16 %v117
    %v157 = vunpack.c.l.b16 %v118
    %v158 = vpack.c.b16 %v143, %v142
    %v159 = vpack.c.b16 %v145, %v144
    %v160 = vpack.c.b16 %v147, %v146
    %v161 = vpack.c.b16 %v149, %v148
    %v162 = vpack.c.b16 %v151, %v150
    %v163 = vpack.c.b16 %v153, %v152
    %v164 = vpack.c.b16 %v155, %v154
    %v165 = vpack.c.b16 %v157, %v156
    %174 = vmatprep.subr.bf16.mxu0 0
    %175 = vmatpush1.bf16.msra.mxu0 %v158
    %176 = vmatprep.subr.bf16.mxu0 0
    %177 = vmatpush1.bf16.msra.mxu0 %v159
    %178 = vmatprep.subr.bf16.mxu0 0
    %179 = vmatpush1.bf16.msra.mxu0 %v160
    %180 = vmatprep.subr.bf16.mxu0 0
    %181 = vmatpush1.bf16.msra.mxu0 %v161
    %182 = vmatprep.subr.bf16.mxu0 0
    %183 = vmatpush1.bf16.msra.mxu0 %v162
    %184 = vmatprep.subr.bf16.mxu0 0
    %185 = vmatpush1.bf16.msra.mxu0 %v163
    %186 = vmatprep.subr.bf16.mxu0 0
    %187 = vmatpush1.bf16.msra.mxu0 %v164
    %188 = vmatprep.subr.bf16.mxu0 0
    %189 = vmatpush1.bf16.msra.mxu0 %v165
    %190 = vmatprep.subr.bf16.mxu0 0
    %191 = vmatpush1.bf16.msra.mxu0 0
    %192 = vmatprep.subr.bf16.mxu0 0
    %193 = vmatpush1.bf16.msra.mxu0 0
    %194 = vmatprep.subr.bf16.mxu0 0
    %195 = vmatpush1.bf16.msra.mxu0 0
    %196 = vmatprep.subr.bf16.mxu0 0
    %197 = vmatpush1.bf16.msra.mxu0 0
    %198 = vmatprep.subr.bf16.mxu0 0
    %199 = vmatpush1.bf16.msra.mxu0 0
    %200 = vmatprep.subr.bf16.mxu0 0
    %201 = vmatpush1.bf16.msra.mxu0 0
    %202 = vmatprep.subr.bf16.mxu0 0
    %203 = vmatpush1.bf16.msra.mxu0 0
    %204 = vmatprep.subr.bf16.mxu0 0
    %205 = vmatpush1.bf16.msra.mxu0 0
    %206 = vmatprep.mubr.bf16.mxu0 0
    %207 = vmatmul.mubr.bf16.gmra.mrb[0].mxu0 %v102
    %v208 = vpop.f32.mrb[0].mxu0
    %v209 = vadd.f32 %v124, %v208
    %v210 = vpop.f32.mrb[0].mxu0
    %v211 = vpop.f32.mrb[0].mxu0
    %v212 = vpop.f32.mrb[0].mxu0
    %213 = vdwg.mxu0
    %v214 = vpack.c.bf16 %v209, %v209
    %v215 = vld [vmem:[#allocation8] sm:$0xff]
    %v216 = vld [vmem:[#allocation8 + $0x8] sm:$0xff]
    %v217 = vld [vmem:[#allocation8 + $0x10] sm:$0xff]
    %v218 = vld [vmem:[#allocation8 + $0x18] sm:$0xff]
    %v219 = vld [vmem:[#allocation8 + $0x20] sm:$0xff]
    %v220 = vld [vmem:[#allocation8 + $0x28] sm:$0xff]
    %v221 = vld [vmem:[#allocation8 + $0x30] sm:$0xff]
    %v222 = vld [vmem:[#allocation8 + $0x38] sm:$0xff]
    %v223 = vld [vmem:[#allocation8 + $0x40] sm:$0xff]
    %v224 = vld [vmem:[#allocation8 + $0x48] sm:$0xff]
    %v225 = vld [vmem:[#allocation8 + $0x50] sm:$0xff]
    %v226 = vld [vmem:[#allocation8 + $0x58] sm:$0xff]
    %v227 = vld [vmem:[#allocation8 + $0x60] sm:$0xff]
    %v228 = vld [vmem:[#allocation8 + $0x68] sm:$0xff]
    %v229 = vld [vmem:[#allocation8 + $0x70] sm:$0xff]
    %v230 = vld [vmem:[#allocation8 + $0x78] sm:$0xff]
    %v247 = vunpack.c.l.b16 %v215
    %v248 = vunpack.c.h.b16 %v215
    %v249 = vunpack.c.l.b16 %v216
    %v250 = vunpack.c.h.b16 %v216
    %v251 = vunpack.c.l.b16 %v217
    %v252 = vunpack.c.h.b16 %v217
    %v253 = vunpack.c.l.b16 %v218
    %v254 = vunpack.c.h.b16 %v218
    %v255 = vunpack.c.l.b16 %v219
    %v256 = vunpack.c.h.b16 %v219
    %v257 = vunpack.c.l.b16 %v220
    %v258 = vunpack.c.h.b16 %v220
    %v259 = vunpack.c.l.b16 %v221
    %v260 = vunpack.c.h.b16 %v221
    %v261 = vunpack.c.l.b16 %v222
    %v262 = vunpack.c.h.b16 %v222
    %v263 = vunpack.c.l.b16 %v223
    %v264 = vunpack.c.h.b16 %v223
    %v265 = vunpack.c.l.b16 %v224
    %v266 = vunpack.c.h.b16 %v224
    %v267 = vunpack.c.l.b16 %v225
    %v268 = vunpack.c.h.b16 %v225
    %v269 = vunpack.c.l.b16 %v226
    %v270 = vunpack.c.h.b16 %v226
    %v271 = vunpack.c.l.b16 %v227
    %v272 = vunpack.c.h.b16 %v227
    %v273 = vunpack.c.l.b16 %v228
    %v274 = vunpack.c.h.b16 %v228
    %v275 = vunpack.c.l.b16 %v229
    %v276 = vunpack.c.h.b16 %v229
    %v277 = vunpack.c.l.b16 %v230
    %v278 = vunpack.c.h.b16 %v230
    %v279 = vpack.c.b16 %v249, %v247
    %v280 = vpack.c.b16 %v250, %v248
    %v281 = vpack.c.b16 %v253, %v251
    %v282 = vpack.c.b16 %v254, %v252
    %v283 = vpack.c.b16 %v257, %v255
    %v284 = vpack.c.b16 %v258, %v256
    %v285 = vpack.c.b16 %v261, %v259
    %v286 = vpack.c.b16 %v262, %v260
    %v287 = vpack.c.b16 %v265, %v263
    %v288 = vpack.c.b16 %v266, %v264
    %v289 = vpack.c.b16 %v269, %v267
    %v290 = vpack.c.b16 %v270, %v268
    %v291 = vpack.c.b16 %v273, %v271
    %v292 = vpack.c.b16 %v274, %v272
    %v293 = vpack.c.b16 %v277, %v275
    %v294 = vpack.c.b16 %v278, %v276
    %311 = vmatprep.subr.bf16.mxu0 %v280
    %312 = vmatpush1.bf16.msra.mxu0 %v279
    %313 = vmatprep.subr.bf16.mxu0 %v282
    %314 = vmatpush1.bf16.msra.mxu0 %v281
    %315 = vmatprep.subr.bf16.mxu0 %v284
    %316 = vmatpush1.bf16.msra.mxu0 %v283
    %317 = vmatprep.subr.bf16.mxu0 %v286
    %318 = vmatpush1.bf16.msra.mxu0 %v285
    %319 = vmatprep.subr.bf16.mxu0 %v288
    %320 = vmatpush1.bf16.msra.mxu0 %v287
    %321 = vmatprep.subr.bf16.mxu0 %v290
    %322 = vmatpush1.bf16.msra.mxu0 %v289
    %323 = vmatprep.subr.bf16.mxu0 %v292
    %324 = vmatpush1.bf16.msra.mxu0 %v291
    %325 = vmatprep.subr.bf16.mxu0 %v294
    %326 = vmatpush1.bf16.msra.mxu0 %v293
    %327 = vmatprep.subr.bf16.mxu0 0
    %328 = vmatpush1.bf16.msra.mxu0 0
    %329 = vmatprep.subr.bf16.mxu0 0
    %330 = vmatpush1.bf16.msra.mxu0 0
    %331 = vmatprep.subr.bf16.mxu0 0
    %332 = vmatpush1.bf16.msra.mxu0 0
    %333 = vmatprep.subr.bf16.mxu0 0
    %334 = vmatpush1.bf16.msra.mxu0 0
    %335 = vmatprep.subr.bf16.mxu0 0
    %336 = vmatpush1.bf16.msra.mxu0 0
    %337 = vmatprep.subr.bf16.mxu0 0
    %338 = vmatpush1.bf16.msra.mxu0 0
    %339 = vmatprep.subr.bf16.mxu0 0
    %340 = vmatpush1.bf16.msra.mxu0 0
    %341 = vmatprep.subr.bf16.mxu0 0
    %342 = vmatpush1.bf16.msra.mxu0 0
    %343 = vmatprep.mubr.bf16.mxu0 0
    %344 = vmatmul.mubr.bf16.gmra.mrb[0].mxu0 %v214
    %v345 = vpop.f32.mrb[0].mxu0
    %v346 = vadd.f32 0.0, %v345
    %v347 = vpop.f32.mrb[0].mxu0
    %v348 = vadd.f32 0.0, %v347
    %v349 = vpop.f32.mrb[0].mxu0
    %v350 = vpop.f32.mrb[0].mxu0
    %351 = vdwg.mxu0
    %v352 = vld [vmem:[#allocation10] sm:$0x1]
    %v354 = vlaneseq
    %v355 = vshrl.u32 %v354, 7
    %v356 = vsub.s32 0, %v355
    %v357 = vrot.slane %v352, %v356
    %v359 = vadd.f32 %v346, %v357
    %v360 = vmax.f32 %v359, 0.0
    %v361 = vpack.c.bf16 %v360, %v360
    %362 = vst [vmem:[#allocation13] sm:$0xf] %v361
    %v363 = vld [vmem:[#allocation11] sm:$0x1]
    %v365 = vlaneseq
    %v366 = vshrl.u32 %v365, 7
    %v367 = vsub.s32 0, %v366
    %v368 = vrot.slane %v363, %v367
    %v370 = vadd.f32 %v348, %v368
    %v371 = vmax.f32 %v370, 0.0
    %v372 = vpack.c.bf16 %v371, %v371
    %373 = vst [vmem:[#allocation14] sm:$0xf] %v372
    // Predicated region
    $region50: #{tpu_custom_call.1} parent=1 // pred_check
      _
    $region51: #{tpu_custom_call.1} parent=1 // pred_check_branch
      %375 = sbr.rel (0) target = $region53
    $region52: #{tpu_custom_call.1} parent=1 // pred_region
      %s377 = ssub.s32 64, 64
      %378 = vsyncadd [#allocation4], %s377
      %s380 = sshll.u32 [#allocation13], 4
      %s381 = int_to_ptr.vmem [resolvable:$true] %s380
      %383 = dma.vmem_to_hbm [thread:$0]  %s381, 64, %s6, [#allocation4]
    $region53: #{tpu_custom_call.1} parent=1 // pred_fallthru
      _
    // Predicated region
    $region54: #{tpu_custom_call.1} parent=1 // pred_check
      _
    $region55: #{tpu_custom_call.1} parent=1 // pred_check_branch
      %385 = sbr.rel (0) target = $region57
    $region56: #{tpu_custom_call.1} parent=1 // pred_region
      %s387 = ssub.s32 64, 64
      %388 = vsyncadd [#allocation15], %s387
      %s390 = sshll.u32 [#allocation14], 4
      %s391 = int_to_ptr.vmem [resolvable:$true] %s390
      %393 = dma.vmem_to_hbm [thread:$0]  %s391, 64, %s7, [#allocation15]
    $region57: #{tpu_custom_call.1} parent=1 // pred_fallthru
      _
    // Predicated region
    $region58: #{tpu_custom_call.1} parent=1 // pred_check
      _
    $region59: #{tpu_custom_call.1} parent=1 // pred_check_branch
      %395 = sbr.rel (0) target = $region61
    $region60: #{tpu_custom_call.1} parent=1 // pred_region
      %396 = dma.done [#allocation4], 64
    $region61: #{tpu_custom_call.1} parent=1 // pred_fallthru
      _
    // Predicated region
    $region62: #{tpu_custom_call.1} parent=1 // pred_check
      _
    $region63: #{tpu_custom_call.1} parent=1 // pred_check_branch
      %398 = sbr.rel (0) target = $region65
    $region64: #{tpu_custom_call.1} parent=1 // pred_region
      %399 = dma.done [#allocation15], 64
    $region65: #{tpu_custom_call.1} parent=1 // pred_fallthru
      _
    %400 = vsyncpa [#allocation3], 1
    %401 = vsyncpa [#allocation6], 1
    %402 = vsyncpa [#allocation9], 1
    %403 = vsyncpa [#allocation12], 1
    %404 = vsyncpa [#allocation4], 1
    %405 = vsyncpa [#allocation15], 1

// kernel: tpu_custom_call.1
$region0: #{tpu_custom_call.1}
  #allocation0 [shape = 'u32[]', space=smem, size = 0x4, offset = 0x4, fixed_abs, tag = 'smem constant byte address 0x4 - core index']
  #allocation1 [shape = 'u32[144,128]{1,0:T(1,128)}', space=vmem, size = 0x12000, scoped, tag = 'internal scratch']
  %s0 = inlined_call_operand.hbm [shape: bf16[8,128], index: 0, kind: input, shape index: {}]
  %s1 = inlined_call_operand.hbm [shape: bf16[128,128], index: 1, kind: input, shape index: {}]
  %s2 = inlined_call_operand.hbm [shape: f32[1,128], index: 2, kind: input, shape index: {}]
  %s3 = inlined_call_operand.hbm [shape: bf16[128,256], index: 3, kind: input, shape index: {}]
  %s4 = inlined_call_operand.hbm [shape: f32[1,128], index: 4, kind: input, shape index: {}]
  %s5 = inlined_call_operand.hbm [shape: f32[1,128], index: 5, kind: input, shape index: {}]
  %s6 = inlined_call_operand.hbm [shape: bf16[8,128], index: 6, kind: output, shape index: {0}]
  %s7 = inlined_call_operand.hbm [shape: bf16[8,128], index: 7, kind: output, shape index: {1}]
  %8 = xla_tuple %s6, %s7
  %s9 = sld [smem:[#allocation0]]
  $region66: #{tpu_custom_call.1} parent=0
    _
  %s11 = ssub.s32 1, %s9
  %s12 = scalar_select 0, %s11, %s9
  $region1: #{tpu_custom_call.1} parent=0
    #allocation2 [shape = 'u8[2048]{0}', space=vmem, size = 0x800, scoped, tag = 'input window, operand 0, single buffered']
    #allocation3 [shape = 's32[1]{0}', space=sflag, size = 0x4, scoped, tag = 'scoped memory for tpu_custom_call.1']
    #allocation4 [shape = 's32[1]{0}', space=sflag, size = 0x4, scoped, tag = 'scoped memory for tpu_custom_call.1']
    #allocation5 [shape = 'u8[32768]{0}', space=vmem, size = 0x8000, scoped, tag = 'input window, operand 1, single buffered']
    #allocation6 [shape = 's32[1]{0}', space=sflag, size = 0x4, scoped, tag = 'scoped memory for tpu_custom_call.1']
    #allocation7 [shape = 'u8[512]{0}', space=vmem, size = 0x400, scoped, tag = 'input window, operand 2, single buffered']
    #allocation8 [shape = 'u8[65536]{0}', space=vmem, size = 0x10000, scoped, tag = 'input window, operand 3, single buffered']
    #allocation9 [shape = 's32[1]{0}', space=sflag, size = 0x4, scoped, tag = 'scoped memory for tpu_custom_call.1']
    #allocation10 [shape = 'u8[512]{0}', space=vmem, size = 0x400, scoped, tag = 'input window, operand 4, single buffered']
    #allocation11 [shape = 'u8[512]{0}', space=vmem, size = 0x400, scoped, tag = 'input window, operand 5, single buffered']
    #allocation12 [shape = 's32[1]{0}', space=sflag, size = 0x4, scoped, tag = 'scoped memory for tpu_custom_call.1']
    #allocation13 [shape = 'u8[2048]{0}', space=vmem, size = 0x800, scoped, tag = 'output window, operand 0, single buffered']
    #allocation14 [shape = 'u8[2048]{0}', space=vmem, size = 0x800, scoped, tag = 'output window, operand 1, single buffered']
    #allocation15 [shape = 's32[1]{0}', space=sflag, size = 0x4, scoped, tag = 'scoped memory for tpu_custom_call.1']
    %13 = vsyncpa [#allocation3], 0
    %14 = vsyncpa [#allocation6], 0
    %15 = vsyncpa [#allocation9], 0
    %16 = vsyncpa [#allocation12], 0
    %17 = vsyncpa [#allocation4], 0
    %18 = vsyncpa [#allocation15], 0
    // Predicated region
    $region2: #{tpu_custom_call.1} parent=1 // pred_check
      _
    $region3: #{tpu_custom_call.1} parent=1 // pred_check_branch
      %20 = sbr.rel (0) target = $region5
    $region4: #{tpu_custom_call.1} parent=1 // pred_region
      %s22 = ssub.s32 64, 64
      %23 = vsyncadd [#allocation3], %s22
      %s25 = sshll.u32 [#allocation2], 4
      %s26 = int_to_ptr.vmem [resolvable:$true] %s25
      %28 = dma.hbm_to_vmem [thread:$0]  %s0, 64, %s26, [#allocation3]
    $region5: #{tpu_custom_call.1} parent=1 // pred_fallthru
      _
    // Predicated region
    $region6: #{tpu_custom_call.1} parent=1 // pred_check
      _
    $region7: #{tpu_custom_call.1} parent=1 // pred_check_branch
      %30 = sbr.rel (0) target = $region9
    $region8: #{tpu_custom_call.1} parent=1 // pred_region
      %s32 = ssub.s32 1024, 1024
      %33 = vsyncadd [#allocation6], %s32
      %s34 = sshll.u32 [#allocation5], 4
      %s35 = int_to_ptr.vmem [resolvable:$true] %s34
      %40 = dma.hbm_to_vmem [thread:$0]  %s1, 1024, %s35, [#allocation6], 64, 64, 4
    $region9: #{tpu_custom_call.1} parent=1 // pred_fallthru
      _
    // Predicated region
    $region10: #{tpu_custom_call.1} parent=1 // pred_check
      _
    $region11: #{tpu_custom_call.1} parent=1 // pred_check_branch
      %42 = sbr.rel (0) target = $region13
    $region12: #{tpu_custom_call.1} parent=1 // pred_region
      %s44 = ssub.s32 16, 16
      %45 = vsyncadd [#allocation6], %s44
      %s47 = sshll.u32 [#allocation7], 4
      %s48 = int_to_ptr.vmem [resolvable:$true] %s47
      %50 = dma.hbm_to_vmem [thread:$0]  %s2, 16, %s48, [#allocation6]
    $region13: #{tpu_custom_call.1} parent=1 // pred_fallthru
      _
    // Predicated region
    $region14: #{tpu_custom_call.1} parent=1 // pred_check
      _
    $region15: #{tpu_custom_call.1} parent=1 // pred_check_branch
      %52 = sbr.rel (0) target = $region17
    $region16: #{tpu_custom_call.1} parent=1 // pred_region
      %s54 = ssub.s32 2048, 2048
      %55 = vsyncadd [#allocation9], %s54
      %s56 = sshll.u32 [#allocation8], 4
      %s57 = int_to_ptr.vmem [resolvable:$true] %s56
      %62 = dma.hbm_to_vmem [thread:$0]  %s3, 2048, %s57, [#allocation9], 128, 128, 8
    $region17: #{tpu_custom_call.1} parent=1 // pred_fallthru
      _
    // Predicated region
    $region18: #{tpu_custom_call.1} parent=1 // pred_check
      _
    $region19: #{tpu_custom_call.1} parent=1 // pred_check_branch
      %64 = sbr.rel (0) target = $region21
    $region20: #{tpu_custom_call.1} parent=1 // pred_region
      %s66 = ssub.s32 16, 16
      %67 = vsyncadd [#allocation9], %s66
      %s69 = sshll.u32 [#allocation10], 4
      %s70 = int_to_ptr.vmem [resolvable:$true] %s69
      %72 = dma.hbm_to_vmem [thread:$0]  %s4, 16, %s70, [#allocation9]
    $region21: #{tpu_custom_call.1} parent=1 // pred_fallthru
      _
    // Predicated region
    $region22: #{tpu_custom_call.1} parent=1 // pred_check
      _
    $region23: #{tpu_custom_call.1} parent=1 // pred_check_branch
      %74 = sbr.rel (0) target = $region25
    $region24: #{tpu_custom_call.1} parent=1 // pred_region
      %s76 = ssub.s32 16, 16
      %77 = vsyncadd [#allocation12], %s76
      %s79 = sshll.u32 [#allocation11], 4
      %s80 = int_to_ptr.vmem [resolvable:$true] %s79
      %82 = dma.hbm_to_vmem [thread:$0]  %s5, 16, %s80, [#allocation12]
    $region25: #{tpu_custom_call.1} parent=1 // pred_fallthru
      _
    // Predicated region
    $region26: #{tpu_custom_call.1} parent=1 // pred_check
      _
    $region27: #{tpu_custom_call.1} parent=1 // pred_check_branch
      %84 = sbr.rel (0) target = $region29
    $region28: #{tpu_custom_call.1} parent=1 // pred_region
      %85 = dma.done [#allocation3], 64
    $region29: #{tpu_custom_call.1} parent=1 // pred_fallthru
      _
    // Predicated region
    $region30: #{tpu_custom_call.1} parent=1 // pred_check
      _
    $region31: #{tpu_custom_call.1} parent=1 // pred_check_branch
      %87 = sbr.rel (0) target = $region33
    $region32: #{tpu_custom_call.1} parent=1 // pred_region
      %88 = dma.done [#allocation6], 1024
    $region33: #{tpu_custom_call.1} parent=1 // pred_fallthru
      _
    // Predicated region
    $region34: #{tpu_custom_call.1} parent=1 // pred_check
      _
    $region35: #{tpu_custom_call.1} parent=1 // pred_check_branch
      %90 = sbr.rel (0) target = $region37
    $region36: #{tpu_custom_call.1} parent=1 // pred_region
      %91 = dma.done [#allocation6], 16
    $region37: #{tpu_custom_call.1} parent=1 // pred_fallthru
      _
    // Predicated region
    $region38: #{tpu_custom_call.1} parent=1 // pred_check
      _
    $region39: #{tpu_custom_call.1} parent=1 // pred_check_branch
      %93 = sbr.rel (0) target = $region41
    $region40: #{tpu_custom_call.1} parent=1 // pred_region
      %94 = dma.done [#allocation9], 2048
    $region41: #{tpu_custom_call.1} parent=1 // pred_fallthru
      _
    // Predicated region
    $region42: #{tpu_custom_call.1} parent=1 // pred_check
      _
    $region43: #{tpu_custom_call.1} parent=1 // pred_check_branch
      %96 = sbr.rel (0) target = $region45
    $region44: #{tpu_custom_call.1} parent=1 // pred_region
      %97 = dma.done [#allocation9], 16
    $region45: #{tpu_custom_call.1} parent=1 // pred_fallthru
      _
    // Predicated region
    $region46: #{tpu_custom_call.1} parent=1 // pred_check
      _
    $region47: #{tpu_custom_call.1} parent=1 // pred_check_branch
      %99 = sbr.rel (0) target = $region49
    $region48: #{tpu_custom_call.1} parent=1 // pred_region
      %100 = dma.done [#allocation12], 16
    $region49: #{tpu_custom_call.1} parent=1 // pred_fallthru
      _
    %v102 = vld [vmem:[#allocation2] sm:$0xf]
    %v103 = vld [vmem:[#allocation5] sm:$0xf]
    %v104 = vld [vmem:[#allocation5 + $0x4] sm:$0xf]
    %v105 = vld [vmem:[#allocation5 + $0x8] sm:$0xf]
    %v106 = vld [vmem:[#allocation5 + $0xc] sm:$0xf]
    %v107 = vld [vmem:[#allocation5 + $0x10] sm:$0xf]
    %v108 = vld [vmem:[#allocation5 + $0x14] sm:$0xf]
    %v109 = vld [vmem:[#allocation5 + $0x18] sm:$0xf]
    %v110 = vld [vmem:[#allocation5 + $0x1c] sm:$0xf]
    %v111 = vld [vmem:[#allocation5 + $0x20] sm:$0xf]
    %v112 = vld [vmem:[#allocation5 + $0x24] sm:$0xf]
    %v113 = vld [vmem:[#allocation5 + $0x28] sm:$0xf]
    %v114 = vld [vmem:[#allocation5 + $0x2c] sm:$0xf]
    %v115 = vld [vmem:[#allocation5 + $0x30] sm:$0xf]
    %v116 = vld [vmem:[#allocation5 + $0x34] sm:$0xf]
    %v117 = vld [vmem:[#allocation5 + $0x38] sm:$0xf]
    %v118 = vld [vmem:[#allocation5 + $0x3c] sm:$0xf]
    %v119 = vld [vmem:[#allocation7] sm:$0x1]
    %v121 = vlaneseq
    %v122 = vshrl.u32 %v121, 7
    %v123 = vsub.s32 0, %v122
    %v124 = vrot.slane %v119, %v123
    %v142 = vunpack.c.l.b16 %v103
    %v143 = vunpack.c.l.b16 %v104
    %v144 = vunpack.c.l.b16 %v105
    %v145 = vunpack.c.l.b16 %v106
    %v146 = vunpack.c.l.b16 %v107
    %v147 = vunpack.c.l.b16 %v108
    %v148 = vunpack.c.l.b16 %v109
    %v149 = vunpack.c.l.b16 %v110
    %v150 = vunpack.c.l.b16 %v111
    %v151 = vunpack.c.l.b16 %v112
    %v152 = vunpack.c.l.b16 %v113
    %v153 = vunpack.c.l.b16 %v114
    %v154 = vunpack.c.l.b16 %v115
    %v155 = vunpack.c.l.b16 %v116
    %v156 = vunpack.c.l.b16 %v117
    %v157 = vunpack.c.l.b16 %v118
    %v158 = vpack.c.b16 %v143, %v142
    %v159 = vpack.c.b16 %v145, %v144
    %v160 = vpack.c.b16 %v147, %v146
    %v161 = vpack.c.b16 %v149, %v148
    %v162 = vpack.c.b16 %v151, %v150
    %v163 = vpack.c.b16 %v153, %v152
    %v164 = vpack.c.b16 %v155, %v154
    %v165 = vpack.c.b16 %v157, %v156
    %174 = vmatprep.subr.bf16.mxu0 0
    %175 = vmatpush1.bf16.msra.mxu0 %v158
    %176 = vmatprep.subr.bf16.mxu0 0
    %177 = vmatpush1.bf16.msra.mxu0 %v159
    %178 = vmatprep.subr.bf16.mxu0 0
    %179 = vmatpush1.bf16.msra.mxu0 %v160
    %180 = vmatprep.subr.bf16.mxu0 0
    %181 = vmatpush1.bf16.msra.mxu0 %v161
    %182 = vmatprep.subr.bf16.mxu0 0
    %183 = vmatpush1.bf16.msra.mxu0 %v162
    %184 = vmatprep.subr.bf16.mxu0 0
    %185 = vmatpush1.bf16.msra.mxu0 %v163
    %186 = vmatprep.subr.bf16.mxu0 0
    %187 = vmatpush1.bf16.msra.mxu0 %v164
    %188 = vmatprep.subr.bf16.mxu0 0
    %189 = vmatpush1.bf16.msra.mxu0 %v165
    %190 = vmatprep.subr.bf16.mxu0 0
    %191 = vmatpush1.bf16.msra.mxu0 0
    %192 = vmatprep.subr.bf16.mxu0 0
    %193 = vmatpush1.bf16.msra.mxu0 0
    %194 = vmatprep.subr.bf16.mxu0 0
    %195 = vmatpush1.bf16.msra.mxu0 0
    %196 = vmatprep.subr.bf16.mxu0 0
    %197 = vmatpush1.bf16.msra.mxu0 0
    %198 = vmatprep.subr.bf16.mxu0 0
    %199 = vmatpush1.bf16.msra.mxu0 0
    %200 = vmatprep.subr.bf16.mxu0 0
    %201 = vmatpush1.bf16.msra.mxu0 0
    %202 = vmatprep.subr.bf16.mxu0 0
    %203 = vmatpush1.bf16.msra.mxu0 0
    %204 = vmatprep.subr.bf16.mxu0 0
    %205 = vmatpush1.bf16.msra.mxu0 0
    %206 = vmatprep.mubr.bf16.mxu0 0
    %207 = vmatmul.mubr.bf16.gmra.mrb[0].mxu0 %v102
    %v208 = vpop.f32.mrb[0].mxu0
    %v209 = vadd.f32 %v124, %v208
    %v210 = vpop.f32.mrb[0].mxu0
    %v211 = vpop.f32.mrb[0].mxu0
    %v212 = vpop.f32.mrb[0].mxu0
    %213 = vdwg.mxu0
    %v214 = vpack.c.bf16 %v209, %v209
    %v215 = vld [vmem:[#allocation8] sm:$0xff]
    %v216 = vld [vmem:[#allocation8 + $0x8] sm:$0xff]
    %v217 = vld [vmem:[#allocation8 + $0x10] sm:$0xff]
    %v218 = vld [vmem:[#allocation8 + $0x18] sm:$0xff]
    %v219 = vld [vmem:[#allocation8 + $0x20] sm:$0xff]
    %v220 = vld [vmem:[#allocation8 + $0x28] sm:$0xff]
    %v221 = vld [vmem:[#allocation8 + $0x30] sm:$0xff]
    %v222 = vld [vmem:[#allocation8 + $0x38] sm:$0xff]
    %v223 = vld [vmem:[#allocation8 + $0x40] sm:$0xff]
    %v224 = vld [vmem:[#allocation8 + $0x48] sm:$0xff]
    %v225 = vld [vmem:[#allocation8 + $0x50] sm:$0xff]
    %v226 = vld [vmem:[#allocation8 + $0x58] sm:$0xff]
    %v227 = vld [vmem:[#allocation8 + $0x60] sm:$0xff]
    %v228 = vld [vmem:[#allocation8 + $0x68] sm:$0xff]
    %v229 = vld [vmem:[#allocation8 + $0x70] sm:$0xff]
    %v230 = vld [vmem:[#allocation8 + $0x78] sm:$0xff]
    %v247 = vunpack.c.l.b16 %v215
    %v248 = vunpack.c.h.b16 %v215
    %v249 = vunpack.c.l.b16 %v216
    %v250 = vunpack.c.h.b16 %v216
    %v251 = vunpack.c.l.b16 %v217
    %v252 = vunpack.c.h.b16 %v217
    %v253 = vunpack.c.l.b16 %v218
    %v254 = vunpack.c.h.b16 %v218
    %v255 = vunpack.c.l.b16 %v219
    %v256 = vunpack.c.h.b16 %v219
    %v257 = vunpack.c.l.b16 %v220
    %v258 = vunpack.c.h.b16 %v220
    %v259 = vunpack.c.l.b16 %v221
    %v260 = vunpack.c.h.b16 %v221
    %v261 = vunpack.c.l.b16 %v222
    %v262 = vunpack.c.h.b16 %v222
    %v263 = vunpack.c.l.b16 %v223
    %v264 = vunpack.c.h.b16 %v223
    %v265 = vunpack.c.l.b16 %v224
    %v266 = vunpack.c.h.b16 %v224
    %v267 = vunpack.c.l.b16 %v225
    %v268 = vunpack.c.h.b16 %v225
    %v269 = vunpack.c.l.b16 %v226
    %v270 = vunpack.c.h.b16 %v226
    %v271 = vunpack.c.l.b16 %v227
    %v272 = vunpack.c.h.b16 %v227
    %v273 = vunpack.c.l.b16 %v228
    %v274 = vunpack.c.h.b16 %v228
    %v275 = vunpack.c.l.b16 %v229
    %v276 = vunpack.c.h.b16 %v229
    %v277 = vunpack.c.l.b16 %v230
    %v278 = vunpack.c.h.b16 %v230
    %v279 = vpack.c.b16 %v249, %v247
    %v280 = vpack.c.b16 %v250, %v248
    %v281 = vpack.c.b16 %v253, %v251
    %v282 = vpack.c.b16 %v254, %v252
    %v283 = vpack.c.b16 %v257, %v255
    %v284 = vpack.c.b16 %v258, %v256
    %v285 = vpack.c.b16 %v261, %v259
    %v286 = vpack.c.b16 %v262, %v260
    %v287 = vpack.c.b16 %v265, %v263
    %v288 = vpack.c.b16 %v266, %v264
    %v289 = vpack.c.b16 %v269, %v267
    %v290 = vpack.c.b16 %v270, %v268
    %v291 = vpack.c.b16 %v273, %v271
    %v292 = vpack.c.b16 %v274, %v272
    %v293 = vpack.c.b16 %v277, %v275
    %v294 = vpack.c.b16 %v278, %v276
    %311 = vmatprep.subr.bf16.mxu0 %v280
    %312 = vmatpush1.bf16.msra.mxu0 %v279
    %313 = vmatprep.subr.bf16.mxu0 %v282
    %314 = vmatpush1.bf16.msra.mxu0 %v281
    %315 = vmatprep.subr.bf16.mxu0 %v284
    %316 = vmatpush1.bf16.msra.mxu0 %v283
    %317 = vmatprep.subr.bf16.mxu0 %v286
    %318 = vmatpush1.bf16.msra.mxu0 %v285
    %319 = vmatprep.subr.bf16.mxu0 %v288
    %320 = vmatpush1.bf16.msra.mxu0 %v287
    %321 = vmatprep.subr.bf16.mxu0 %v290
    %322 = vmatpush1.bf16.msra.mxu0 %v289
    %323 = vmatprep.subr.bf16.mxu0 %v292
    %324 = vmatpush1.bf16.msra.mxu0 %v291
    %325 = vmatprep.subr.bf16.mxu0 %v294
    %326 = vmatpush1.bf16.msra.mxu0 %v293
    %327 = vmatprep.subr.bf16.mxu0 0
    %328 = vmatpush1.bf16.msra.mxu0 0
    %329 = vmatprep.subr.bf16.mxu0 0
    %330 = vmatpush1.bf16.msra.mxu0 0
    %331 = vmatprep.subr.bf16.mxu0 0
    %332 = vmatpush1.bf16.msra.mxu0 0
    %333 = vmatprep.subr.bf16.mxu0 0
    %334 = vmatpush1.bf16.msra.mxu0 0
    %335 = vmatprep.subr.bf16.mxu0 0
    %336 = vmatpush1.bf16.msra.mxu0 0
    %337 = vmatprep.subr.bf16.mxu0 0
    %338 = vmatpush1.bf16.msra.mxu0 0
    %339 = vmatprep.subr.bf16.mxu0 0
    %340 = vmatpush1.bf16.msra.mxu0 0
    %341 = vmatprep.subr.bf16.mxu0 0
    %342 = vmatpush1.bf16.msra.mxu0 0
    %343 = vmatprep.mubr.bf16.mxu0 0
    %344 = vmatmul.mubr.bf16.gmra.mrb[0].mxu0 %v214
    %v345 = vpop.f32.mrb[0].mxu0
    %v346 = vadd.f32 0.0, %v345
    %v347 = vpop.f32.mrb[0].mxu0
    %v348 = vadd.f32 0.0, %v347
    %v349 = vpop.f32.mrb[0].mxu0
    %v350 = vpop.f32.mrb[0].mxu0
    %351 = vdwg.mxu0
    %v352 = vld [vmem:[#allocation10] sm:$0x1]
    %v354 = vlaneseq
    %v355 = vshrl.u32 %v354, 7
    %v356 = vsub.s32 0, %v355
    %v357 = vrot.slane %v352, %v356
    %v359 = vadd.f32 %v346, %v357
    %v360 = vmax.f32 %v359, 0.0
    %v361 = vpack.c.bf16 %v360, %v360
    %362 = vst [vmem:[#allocation13] sm:$0xf] %v361
    %v363 = vld [vmem:[#allocation11] sm:$0x1]
    %v365 = vlaneseq
    %v366 = vshrl.u32 %v365, 7
    %v367 = vsub.s32 0, %v366
    %v368 = vrot.slane %v363, %v367
    %v370 = vadd.f32 %v348, %v368
    %v371 = vmax.f32 %v370, 0.0
    %v372 = vpack.c.bf16 %v371, %v371
    %373 = vst [vmem:[#allocation14] sm:$0xf] %v372
    // Predicated region
    $region50: #{tpu_custom_call.1} parent=1 // pred_check
      _
    $region51: #{tpu_custom_call.1} parent=1 // pred_check_branch
      %375 = sbr.rel (0) target = $region53
    $region52: #{tpu_custom_call.1} parent=1 // pred_region
      %s377 = ssub.s32 64, 64
      %378 = vsyncadd [#allocation4], %s377
      %s380 = sshll.u32 [#allocation13], 4
      %s381 = int_to_ptr.vmem [resolvable:$true] %s380
      %383 = dma.vmem_to_hbm [thread:$0]  %s381, 64, %s6, [#allocation4]
    $region53: #{tpu_custom_call.1} parent=1 // pred_fallthru
      _
    // Predicated region
    $region54: #{tpu_custom_call.1} parent=1 // pred_check
      _
    $region55: #{tpu_custom_call.1} parent=1 // pred_check_branch
      %385 = sbr.rel (0) target = $region57
    $region56: #{tpu_custom_call.1} parent=1 // pred_region
      %s387 = ssub.s32 64, 64
      %388 = vsyncadd [#allocation15], %s387
      %s390 = sshll.u32 [#allocation14], 4
      %s391 = int_to_ptr.vmem [resolvable:$true] %s390
      %393 = dma.vmem_to_hbm [thread:$0]  %s391, 64, %s7, [#allocation15]
    $region57: #{tpu_custom_call.1} parent=1 // pred_fallthru
      _
    // Predicated region
    $region58: #{tpu_custom_call.1} parent=1 // pred_check
      _
    $region59: #{tpu_custom_call.1} parent=1 // pred_check_branch
      %395 = sbr.rel (0) target = $region61
    $region60: #{tpu_custom_call.1} parent=1 // pred_region
      %396 = dma.done [#allocation4], 64
    $region61: #{tpu_custom_call.1} parent=1 // pred_fallthru
      _
    // Predicated region
    $region62: #{tpu_custom_call.1} parent=1 // pred_check
      _
    $region63: #{tpu_custom_call.1} parent=1 // pred_check_branch
      %398 = sbr.rel (0) target = $region65
    $region64: #{tpu_custom_call.1} parent=1 // pred_region
      %399 = dma.done [#allocation15], 64
    $region65: #{tpu_custom_call.1} parent=1 // pred_fallthru
      _
    %400 = vsyncpa [#allocation3], 1
    %401 = vsyncpa [#allocation6], 1
    %402 = vsyncpa [#allocation9], 1
    %403 = vsyncpa [#allocation12], 1
    %404 = vsyncpa [#allocation4], 1
    %405 = vsyncpa [#allocation15], 1

</llo_original>
